<compile_context>
chip_gen: v5e
topology: v5e:2x2
jax: 0.10.0
libtpu: 0.0.40
codegen_flags: <defaults>
</compile_context>

<pallas_src>
import functools

import jax
import jax.numpy as jnp
from jax.experimental import pallas as pl
from jax.experimental.pallas import tpu as pltpu


def classifier_kernel(x_ref, w1_ref, b1_ref, w2_ref, b2_ref, w3_ref, b3_ref,
                      o_ref):
    x = x_ref[...]                                            # [TB, D]  f32
    x_bf = x.astype(jnp.bfloat16)

    # fc1: Linear(D, 256) -> ReLU  (bf16 MXU inputs, f32 accumulate)
    h = jnp.dot(x_bf, w1_ref[...],
                preferred_element_type=jnp.float32) + b1_ref[...]
    h = jnp.maximum(h, 0.0)                                   # ReLU (f32 VPU)

    # fc1 tail: Linear(256, D), then residual add in f32
    y = jnp.dot(h.astype(jnp.bfloat16), w2_ref[...],
                preferred_element_type=jnp.float32) + b2_ref[...]
    y = y + x                                                 # residual (f32)

    # fc2: Linear(D, C_pad)  (lane-dense, unmasked store)
    o_ref[...] = (jnp.dot(y.astype(jnp.bfloat16), w3_ref[...],
                          preferred_element_type=jnp.float32)
                  + b3_ref[...]).astype(o_ref.dtype)


@functools.partial(jax.jit, static_argnames=("tb",))
def classifier_forward(x, w1, b1, w2, b2, w3, b3, *, tb=128):
    B, D = x.shape
    H = w1.shape[1]
    C = w3.shape[1]

    # Lane-dense output: pad the class dimension up to a multiple of 128.
    C_pad = pl.cdiv(C, 128) * 128
    if C_pad != C:
        w3 = jnp.pad(w3, ((0, 0), (0, C_pad - C)))
        b3 = jnp.pad(b3, ((0, 0), (0, C_pad - C)))

    # Pad batch up to a multiple of the MXU-aligned tile.
    B_pad = pl.cdiv(B, tb) * tb
    if B_pad != B:
        x = jnp.pad(x, ((0, B_pad - B), (0, 0)))

    # bf16 matmul operands; biases stay f32 (f32 accumulate in-kernel).
    w1 = w1.astype(jnp.bfloat16)
    w2 = w2.astype(jnp.bfloat16)
    w3 = w3.astype(jnp.bfloat16)

    resident = lambda shape: pl.BlockSpec(shape, lambda i: (0, 0))

    out = pl.pallas_call(
        classifier_kernel,
        out_shape=jax.ShapeDtypeStruct((B_pad, C_pad), jnp.float32),
        grid=(B_pad // tb,),
        in_specs=[
            pl.BlockSpec((tb, D), lambda i: (i, 0)),   # x: tiled over batch
            resident((D, H)), resident((1, H)),        # w1, b1 (VMEM-resident)
            resident((H, D)), resident((1, D)),        # w2, b2
            resident((D, C_pad)), resident((1, C_pad)),  # w3, b3 (padded)
        ],
        out_specs=pl.BlockSpec((tb, C_pad), lambda i: (i, 0)),
        compiler_params=pltpu.CompilerParams(
            dimension_semantics=("parallel",)),
    )(x, w1, b1, w2, b2, w3, b3)

    return out[:B, :C]


def init_params(key, input_dim, hidden, num_classes):
    # Deterministic init; weights stored as [in, out] (pre-transposed vs torch).
    ks = jax.random.split(key, 6)
    s1 = 1.0 / jnp.sqrt(input_dim)
    s2 = 1.0 / jnp.sqrt(hidden)
    s3 = 1.0 / jnp.sqrt(input_dim)
    w1 = jax.random.uniform(ks[0], (input_dim, hidden), jnp.float32, -s1, s1)
    b1 = jax.random.uniform(ks[1], (1, hidden), jnp.float32, -s1, s1)
    w2 = jax.random.uniform(ks[2], (hidden, input_dim), jnp.float32, -s2, s2)
    b2 = jax.random.uniform(ks[3], (1, input_dim), jnp.float32, -s2, s2)
    w3 = jax.random.uniform(ks[4], (input_dim, num_classes), jnp.float32, -s3, s3)
    b3 = jax.random.uniform(ks[5], (1, num_classes), jnp.float32, -s3, s3)
    return w1, b1, w2, b2, w3, b3


def reference_forward(x, w1, b1, w2, b2, w3, b3):
    # Same math as the PyTorch forward, with the same bf16-operand / f32-acc
    # rounding the kernel applies (weights & dot operands through bf16).
    f32 = jnp.float32
    bf = lambda a: a.astype(jnp.bfloat16).astype(f32)
    h = jnp.maximum(jnp.dot(bf(x), bf(w1)) + b1, 0.0)
    y = jnp.dot(bf(h), bf(w2)) + b2 + x
    return jnp.dot(bf(y), bf(w3)) + b3


if __name__ == "__main__":
    batch = 8
    input_dim = 32
    hidden = 256        # fixed by the module definition
    num_classes = 10

    key = jax.random.PRNGKey(0)
    kx, kp = jax.random.split(key)
    x = jax.random.normal(kx, (batch, input_dim), jnp.float32)
    params = init_params(kp, input_dim, hidden, num_classes)

    out = classifier_forward(x, *params)
    out = jax.block_until_ready(out)

    ref = reference_forward(x, *params)
    assert out.shape == (batch, num_classes)
    assert jnp.allclose(out, ref, atol=1e-3, rtol=1e-3), (
        float(jnp.max(jnp.abs(out - ref))))

    print("KERNEL_OK")
</pallas_src>

<mosaic_0001>
module attributes {stable_mosaic.version = 11 : i64} {
  func.func @classifier_kernel(%arg0: i32, %arg1: memref<128x32xf32, #tpu.memory_space<vmem>>, %arg2: memref<32x256xbf16, #tpu.memory_space<vmem>>, %arg3: memref<1x256xf32, #tpu.memory_space<vmem>>, %arg4: memref<256x32xbf16, #tpu.memory_space<vmem>>, %arg5: memref<1x32xf32, #tpu.memory_space<vmem>>, %arg6: memref<32x128xbf16, #tpu.memory_space<vmem>>, %arg7: memref<1x128xf32, #tpu.memory_space<vmem>>, %arg8: memref<128x128xf32, #tpu.memory_space<vmem>>) attributes {dimension_semantics = [#tpu.dimension_semantics<parallel>], iteration_bounds = array<i64: 1>, scalar_prefetch = 0 : i64, scratch_operands = 0 : i64, tpu.core_type = #tpu.core_type<tc>, window_params = [{transform_indices = @transform_0, window_bounds = array<i64: 128, 32>}, {pipeline_mode = #tpu.pipeline_mode<synchronous>, transform_indices = @transform_1, window_bounds = array<i64: 32, 256>}, {pipeline_mode = #tpu.pipeline_mode<synchronous>, transform_indices = @transform_2, window_bounds = array<i64: 1, 256>}, {pipeline_mode = #tpu.pipeline_mode<synchronous>, transform_indices = @transform_3, window_bounds = array<i64: 256, 32>}, {pipeline_mode = #tpu.pipeline_mode<synchronous>, transform_indices = @transform_4, window_bounds = array<i64: 1, 32>}, {pipeline_mode = #tpu.pipeline_mode<synchronous>, transform_indices = @transform_5, window_bounds = array<i64: 32, 128>}, {pipeline_mode = #tpu.pipeline_mode<synchronous>, transform_indices = @transform_6, window_bounds = array<i64: 1, 128>}, {transform_indices = @transform_7, window_bounds = array<i64: 128, 128>}]} {
    %c0 = arith.constant 0 : index
    %c0_0 = arith.constant 0 : index
    %0 = vector.load %arg1[%c0, %c0_0] : memref<128x32xf32, #tpu.memory_space<vmem>>, vector<128x32xf32>
    %1 = arith.truncf %0 : vector<128x32xf32> to vector<128x32xbf16>
    %c0_1 = arith.constant 0 : index
    %c0_2 = arith.constant 0 : index
    %2 = vector.load %arg2[%c0_1, %c0_2] : memref<32x256xbf16, #tpu.memory_space<vmem>>, vector<32x256xbf16>
    %cst = arith.constant dense<0.000000e+00> : vector<128x256xf32>
    %3 = tpu.matmul %1, %2, %cst {dimension_numbers = #tpu.dot_dimension_numbers<[1], [0], [0], [1], [0, 0, 1, 1], [], []>} : vector<128x32xbf16>, vector<32x256xbf16>, vector<128x256xf32> -> vector<128x256xf32>
    %c0_3 = arith.constant 0 : index
    %c0_4 = arith.constant 0 : index
    %4 = vector.load %arg3[%c0_3, %c0_4] : memref<1x256xf32, #tpu.memory_space<vmem>>, vector<1x256xf32>
    %5 = vector.broadcast %4 : vector<1x256xf32> to vector<128x256xf32>
    %6 = arith.addf %3, %5 : vector<128x256xf32>
    %cst_5 = arith.constant 0.000000e+00 : f32
    %7 = vector.broadcast %cst_5 : f32 to vector<128x256xf32>
    %8 = arith.maximumf %6, %7 : vector<128x256xf32>
    %9 = arith.truncf %8 : vector<128x256xf32> to vector<128x256xbf16>
    %c0_6 = arith.constant 0 : index
    %c0_7 = arith.constant 0 : index
    %10 = vector.load %arg4[%c0_6, %c0_7] : memref<256x32xbf16, #tpu.memory_space<vmem>>, vector<256x32xbf16>
    %cst_8 = arith.constant dense<0.000000e+00> : vector<128x32xf32>
    %11 = tpu.matmul %9, %10, %cst_8 {dimension_numbers = #tpu.dot_dimension_numbers<[1], [0], [0], [1], [0, 0, 1, 1], [], []>} : vector<128x256xbf16>, vector<256x32xbf16>, vector<128x32xf32> -> vector<128x32xf32>
    %c0_9 = arith.constant 0 : index
    %c0_10 = arith.constant 0 : index
    %12 = vector.load %arg5[%c0_9, %c0_10] : memref<1x32xf32, #tpu.memory_space<vmem>>, vector<1x32xf32>
    %13 = vector.broadcast %12 : vector<1x32xf32> to vector<128x32xf32>
    %14 = arith.addf %11, %13 : vector<128x32xf32>
    %15 = arith.addf %14, %0 : vector<128x32xf32>
    %16 = arith.truncf %15 : vector<128x32xf32> to vector<128x32xbf16>
    %c0_11 = arith.constant 0 : index
    %c0_12 = arith.constant 0 : index
    %17 = vector.load %arg6[%c0_11, %c0_12] : memref<32x128xbf16, #tpu.memory_space<vmem>>, vector<32x128xbf16>
    %cst_13 = arith.constant dense<0.000000e+00> : vector<128x128xf32>
    %18 = tpu.matmul %16, %17, %cst_13 {dimension_numbers = #tpu.dot_dimension_numbers<[1], [0], [0], [1], [0, 0, 1, 1], [], []>} : vector<128x32xbf16>, vector<32x128xbf16>, vector<128x128xf32> -> vector<128x128xf32>
    %c0_14 = arith.constant 0 : index
    %c0_15 = arith.constant 0 : index
    %19 = vector.load %arg7[%c0_14, %c0_15] : memref<1x128xf32, #tpu.memory_space<vmem>>, vector<1x128xf32>
    %20 = vector.broadcast %19 : vector<1x128xf32> to vector<128x128xf32>
    %21 = arith.addf %18, %20 : vector<128x128xf32>
    %c0_16 = arith.constant 0 : index
    %c0_17 = arith.constant 0 : index
    %22 = vector.load %arg8[%c0_16, %c0_17] : memref<128x128xf32, #tpu.memory_space<vmem>>, vector<128x128xf32>
    tpu.vector_store %arg8[%c0_16, %c0_17], %21 {strides = array<i32>} : memref<128x128xf32, #tpu.memory_space<vmem>>, vector<128x128xf32>,
    return
  }
  func.func @transform_0(%arg0: i32) -> (i32, i32) {
    %c0_i32 = arith.constant 0 : i32
    %c0_i32_0 = arith.constant 0 : i32
    return %arg0, %c0_i32 : i32, i32
  }
  func.func @transform_1(%arg0: i32) -> (i32, i32) {
    %c0_i32 = arith.constant 0 : i32
    %c0_i32_0 = arith.constant 0 : i32
    %c0_i32_1 = arith.constant 0 : i32
    return %c0_i32, %c0_i32_0 : i32, i32
  }
  func.func @transform_2(%arg0: i32) -> (i32, i32) {
    %c0_i32 = arith.constant 0 : i32
    %c0_i32_0 = arith.constant 0 : i32
    %c0_i32_1 = arith.constant 0 : i32
    return %c0_i32, %c0_i32_0 : i32, i32
  }
  func.func @transform_3(%arg0: i32) -> (i32, i32) {
    %c0_i32 = arith.constant 0 : i32
    %c0_i32_0 = arith.constant 0 : i32
    %c0_i32_1 = arith.constant 0 : i32
    return %c0_i32, %c0_i32_0 : i32, i32
  }
  func.func @transform_4(%arg0: i32) -> (i32, i32) {
    %c0_i32 = arith.constant 0 : i32
    %c0_i32_0 = arith.constant 0 : i32
    %c0_i32_1 = arith.constant 0 : i32
    return %c0_i32, %c0_i32_0 : i32, i32
  }
  func.func @transform_5(%arg0: i32) -> (i32, i32) {
    %c0_i32 = arith.constant 0 : i32
    %c0_i32_0 = arith.constant 0 : i32
    %c0_i32_1 = arith.constant 0 : i32
    return %c0_i32, %c0_i32_0 : i32, i32
  }
  func.func @transform_6(%arg0: i32) -> (i32, i32) {
    %c0_i32 = arith.constant 0 : i32
    %c0_i32_0 = arith.constant 0 : i32
    %c0_i32_1 = arith.constant 0 : i32
    return %c0_i32, %c0_i32_0 : i32, i32
  }
  func.func @transform_7(%arg0: i32) -> (i32, i32) {
    %c0_i32 = arith.constant 0 : i32
    %c0_i32_0 = arith.constant 0 : i32
    return %arg0, %c0_i32 : i32, i32
  }
}

</mosaic_0001>

<llo_original>
// kernel: classifier_forward.1
$region0: #{classifier_forward.1}
  #allocation0 [shape = 'u32[]', space=smem, size = 0x4, offset = 0x4, fixed_abs, tag = 'smem constant byte address 0x4 - core index']
  #allocation1 [shape = 'u32[72,128]{1,0:T(1,128)}', space=vmem, size = 0x9000, scoped, tag = 'internal scratch']
  %s0 = inlined_call_operand.vmem [shape: f32[128,32], index: 0, kind: input, shape index: {}]
  %s1 = inlined_call_operand.vmem [shape: bf16[32,256], index: 1, kind: input, shape index: {}]
  %s2 = inlined_call_operand.vmem [shape: f32[1,256], index: 2, kind: input, shape index: {}]
  %s3 = inlined_call_operand.vmem [shape: bf16[256,32], index: 3, kind: input, shape index: {}]
  %s4 = inlined_call_operand.vmem [shape: f32[1,32], index: 4, kind: input, shape index: {}]
  %s5 = inlined_call_operand.vmem [shape: bf16[32,128], index: 5, kind: input, shape index: {}]
  %s6 = inlined_call_operand.vmem [shape: f32[1,128], index: 6, kind: input, shape index: {}]
  %s7 = inlined_call_operand.vmem [shape: f32[128,128], index: 7, kind: output, shape index: {}]
  %s8 = sld [smem:[#allocation0]]
  $region38: #{classifier_forward.1} parent=0
    _
  %s10 = ssub.s32 1, %s8
  %s11 = scalar_select 0, %s10, %s8
  // Predicated region
  $region2: #{classifier_forward.1} parent=0 // pred_check
    _
  $region3: #{classifier_forward.1} parent=0 // pred_check_branch
    %13 = sbr.rel (0) target = $region5
  $region4: #{classifier_forward.1} parent=0 // pred_region
    _
  $region5: #{classifier_forward.1} parent=0 // pred_fallthru
    _
  // Predicated region
  $region6: #{classifier_forward.1} parent=0 // pred_check
    _
  $region7: #{classifier_forward.1} parent=0 // pred_check_branch
    %15 = sbr.rel (0) target = $region9
  $region8: #{classifier_forward.1} parent=0 // pred_region
    _
  $region9: #{classifier_forward.1} parent=0 // pred_fallthru
    _
  // Predicated region
  $region10: #{classifier_forward.1} parent=0 // pred_check
    _
  $region11: #{classifier_forward.1} parent=0 // pred_check_branch
    %17 = sbr.rel (0) target = $region13
  $region12: #{classifier_forward.1} parent=0 // pred_region
    _
  $region13: #{classifier_forward.1} parent=0 // pred_fallthru
    _
  // Predicated region
  $region14: #{classifier_forward.1} parent=0 // pred_check
    _
  $region15: #{classifier_forward.1} parent=0 // pred_check_branch
    %19 = sbr.rel (0) target = $region17
  $region16: #{classifier_forward.1} parent=0 // pred_region
    _
  $region17: #{classifier_forward.1} parent=0 // pred_fallthru
    _
  // Predicated region
  $region18: #{classifier_forward.1} parent=0 // pred_check
    _
  $region19: #{classifier_forward.1} parent=0 // pred_check_branch
    %21 = sbr.rel (0) target = $region21
  $region20: #{classifier_forward.1} parent=0 // pred_region
    _
  $region21: #{classifier_forward.1} parent=0 // pred_fallthru
    _
  // Predicated region
  $region22: #{classifier_forward.1} parent=0 // pred_check
    _
  $region23: #{classifier_forward.1} parent=0 // pred_check_branch
    %23 = sbr.rel (0) target = $region25
  $region24: #{classifier_forward.1} parent=0 // pred_region
    _
  $region25: #{classifier_forward.1} parent=0 // pred_fallthru
    _
  // Predicated region
  $region26: #{classifier_forward.1} parent=0 // pred_check
    _
  $region27: #{classifier_forward.1} parent=0 // pred_check_branch
    %25 = sbr.rel (0) target = $region29
  $region28: #{classifier_forward.1} parent=0 // pred_region
    _
  $region29: #{classifier_forward.1} parent=0 // pred_fallthru
    _
  %v27 = vld [vmem:[%s0] sm:$0xff]
  %v28 = vld [vmem:[%s0 + $0x8] sm:$0xff]
  %v29 = vld [vmem:[%s0 + $0x10] sm:$0xff]
  %v30 = vld [vmem:[%s0 + $0x18] sm:$0xff]
  %v31 = vld [vmem:[%s0 + $0x20] sm:$0xff]
  %v32 = vld [vmem:[%s0 + $0x28] sm:$0xff]
  %v33 = vld [vmem:[%s0 + $0x30] sm:$0xff]
  %v34 = vld [vmem:[%s0 + $0x38] sm:$0xff]
  %v35 = vld [vmem:[%s0 + $0x40] sm:$0xff]
  %v36 = vld [vmem:[%s0 + $0x48] sm:$0xff]
  %v37 = vld [vmem:[%s0 + $0x50] sm:$0xff]
  %v38 = vld [vmem:[%s0 + $0x58] sm:$0xff]
  %v39 = vld [vmem:[%s0 + $0x60] sm:$0xff]
  %v40 = vld [vmem:[%s0 + $0x68] sm:$0xff]
  %v41 = vld [vmem:[%s0 + $0x70] sm:$0xff]
  %v42 = vld [vmem:[%s0 + $0x78] sm:$0xff]
  %v43 = vpack.c.bf16 %v28, %v27
  %v44 = vpack.c.bf16 %v30, %v29
  %v45 = vpack.c.bf16 %v32, %v31
  %v46 = vpack.c.bf16 %v34, %v33
  %v47 = vpack.c.bf16 %v36, %v35
  %v48 = vpack.c.bf16 %v38, %v37
  %v49 = vpack.c.bf16 %v40, %v39
  %v50 = vpack.c.bf16 %v42, %v41
  %v51 = vld [vmem:[%s1] sm:$0xff]
  %v52 = vld [vmem:[%s1 + $0x8] sm:$0xff]
  %v53 = vld [vmem:[%s1 + $0x10] sm:$0xff]
  %v54 = vld [vmem:[%s1 + $0x18] sm:$0xff]
  %v55 = vld [vmem:[%s2] sm:$0x3]
  %v57 = vperm.slane %v55, 0
  %v58 = vperm.slane %v55, 1
  %v65 = vunpack.c.l.b16 %v51
  %v66 = vunpack.c.h.b16 %v51
  %v67 = vunpack.c.l.b16 %v52
  %v68 = vunpack.c.h.b16 %v52
  %v69 = vunpack.c.l.b16 %v53
  %v70 = vunpack.c.h.b16 %v53
  %v71 = vunpack.c.l.b16 %v54
  %v72 = vunpack.c.h.b16 %v54
  %v73 = vpack.c.b16 %v67, %v65
  %v74 = vpack.c.b16 %v68, %v66
  %v75 = vpack.c.b16 %v71, %v69
  %v76 = vpack.c.b16 %v72, %v70
  %vm81 = vcmask 261120
  %v83 = vsel %vm81, %v43, 0
  %v86 = vsel %vm81, %v44, 0
  %v89 = vsel %vm81, %v45, 0
  %v92 = vsel %vm81, %v46, 0
  %v95 = vsel %vm81, %v47, 0
  %v98 = vsel %vm81, %v48, 0
  %v101 = vsel %vm81, %v49, 0
  %v104 = vsel %vm81, %v50, 0
  %106 = vmatpush.bf16.msra.mxu0 0
  %107 = vmatpush.bf16.msra.mxu0 0
  %108 = vmatpush.bf16.msra.mxu0 0
  %109 = vmatpush.bf16.msra.mxu0 0
  %110 = vmatpush.bf16.msra.mxu0 0
  %111 = vmatpush.bf16.msra.mxu0 0
  %112 = vmatpush.bf16.msra.mxu0 %v75
  %113 = vmatpush.bf16.msra.mxu0 %v73
  %114 = vmatmul.bf16.gmra.mxu0 %v83
  %v115 = vpop.f32.mrf.mxu0
  %v116 = vadd.f32 %v57, %v115
  %v117 = vpop.f32.mrf.mxu0
  %v118 = vadd.f32 %v57, %v117
  %119 = vmatmul.bf16.gmra.mxu0 %v86
  %v120 = vpop.f32.mrf.mxu0
  %v121 = vadd.f32 %v57, %v120
  %v122 = vpop.f32.mrf.mxu0
  %v123 = vadd.f32 %v57, %v122
  %124 = vmatmul.bf16.gmra.mxu0 %v89
  %v125 = vpop.f32.mrf.mxu0
  %v126 = vadd.f32 %v57, %v125
  %v127 = vpop.f32.mrf.mxu0
  %v128 = vadd.f32 %v57, %v127
  %129 = vmatmul.bf16.gmra.mxu0 %v92
  %v130 = vpop.f32.mrf.mxu0
  %v131 = vadd.f32 %v57, %v130
  %v132 = vpop.f32.mrf.mxu0
  %v133 = vadd.f32 %v57, %v132
  %134 = vmatmul.bf16.gmra.mxu0 %v95
  %v135 = vpop.f32.mrf.mxu0
  %v136 = vadd.f32 %v57, %v135
  %v137 = vpop.f32.mrf.mxu0
  %v138 = vadd.f32 %v57, %v137
  %139 = vmatmul.bf16.gmra.mxu0 %v98
  %v140 = vpop.f32.mrf.mxu0
  %v141 = vadd.f32 %v57, %v140
  %v142 = vpop.f32.mrf.mxu0
  %v143 = vadd.f32 %v57, %v142
  %144 = vmatmul.bf16.gmra.mxu0 %v101
  %v145 = vpop.f32.mrf.mxu0
  %v146 = vadd.f32 %v57, %v145
  %v147 = vpop.f32.mrf.mxu0
  %v148 = vadd.f32 %v57, %v147
  %149 = vmatmul.bf16.gmra.mxu0 %v104
  %v150 = vpop.f32.mrf.mxu0
  %v151 = vadd.f32 %v57, %v150
  %v152 = vpop.f32.mrf.mxu0
  %v153 = vadd.f32 %v57, %v152
  %154 = vdwg.mxu0
  %155 = vmatpush.bf16.msra.mxu0 0
  %156 = vmatpush.bf16.msra.mxu0 0
  %157 = vmatpush.bf16.msra.mxu0 0
  %158 = vmatpush.bf16.msra.mxu0 0
  %159 = vmatpush.bf16.msra.mxu0 0
  %160 = vmatpush.bf16.msra.mxu0 0
  %161 = vmatpush.bf16.msra.mxu0 %v76
  %162 = vmatpush.bf16.msra.mxu0 %v74
  %163 = vmatmul.bf16.gmra.mxu0 %v83
  %v164 = vpop.f32.mrf.mxu0
  %v165 = vadd.f32 %v58, %v164
  %v166 = vpop.f32.mrf.mxu0
  %v167 = vadd.f32 %v58, %v166
  %168 = vmatmul.bf16.gmra.mxu0 %v86
  %v169 = vpop.f32.mrf.mxu0
  %v170 = vadd.f32 %v58, %v169
  %v171 = vpop.f32.mrf.mxu0
  %v172 = vadd.f32 %v58, %v171
  %173 = vmatmul.bf16.gmra.mxu0 %v89
  %v174 = vpop.f32.mrf.mxu0
  %v175 = vadd.f32 %v58, %v174
  %v176 = vpop.f32.mrf.mxu0
  %v177 = vadd.f32 %v58, %v176
  %178 = vmatmul.bf16.gmra.mxu0 %v92
  %v179 = vpop.f32.mrf.mxu0
  %v180 = vadd.f32 %v58, %v179
  %v181 = vpop.f32.mrf.mxu0
  %v182 = vadd.f32 %v58, %v181
  %183 = vmatmul.bf16.gmra.mxu0 %v95
  %v184 = vpop.f32.mrf.mxu0
  %v185 = vadd.f32 %v58, %v184
  %v186 = vpop.f32.mrf.mxu0
  %v187 = vadd.f32 %v58, %v186
  %188 = vmatmul.bf16.gmra.mxu0 %v98
  %v189 = vpop.f32.mrf.mxu0
  %v190 = vadd.f32 %v58, %v189
  %v191 = vpop.f32.mrf.mxu0
  %v192 = vadd.f32 %v58, %v191
  %193 = vmatmul.bf16.gmra.mxu0 %v101
  %v194 = vpop.f32.mrf.mxu0
  %v195 = vadd.f32 %v58, %v194
  %v196 = vpop.f32.mrf.mxu0
  %v197 = vadd.f32 %v58, %v196
  %198 = vmatmul.bf16.gmra.mxu0 %v104
  %v199 = vpop.f32.mrf.mxu0
  %v200 = vadd.f32 %v58, %v199
  %v201 = vpop.f32.mrf.mxu0
  %v202 = vadd.f32 %v58, %v201
  %203 = vdwg.mxu0
  %v204 = vmax.f32 %v116, 0.0
  %v205 = vmax.f32 %v165, 0.0
  %v206 = vmax.f32 %v118, 0.0
  %v207 = vmax.f32 %v167, 0.0
  %v208 = vmax.f32 %v121, 0.0
  %v209 = vmax.f32 %v170, 0.0
  %v210 = vmax.f32 %v123, 0.0
  %v211 = vmax.f32 %v172, 0.0
  %v212 = vmax.f32 %v126, 0.0
  %v213 = vmax.f32 %v175, 0.0
  %v214 = vmax.f32 %v128, 0.0
  %v215 = vmax.f32 %v177, 0.0
  %v216 = vmax.f32 %v131, 0.0
  %v217 = vmax.f32 %v180, 0.0
  %v218 = vmax.f32 %v133, 0.0
  %v219 = vmax.f32 %v182, 0.0
  %v220 = vmax.f32 %v136, 0.0
  %v221 = vmax.f32 %v185, 0.0
  %v222 = vmax.f32 %v138, 0.0
  %v223 = vmax.f32 %v187, 0.0
  %v224 = vmax.f32 %v141, 0.0
  %v225 = vmax.f32 %v190, 0.0
  %v226 = vmax.f32 %v143, 0.0
  %v227 = vmax.f32 %v192, 0.0
  %v228 = vmax.f32 %v146, 0.0
  %v229 = vmax.f32 %v195, 0.0
  %v230 = vmax.f32 %v148, 0.0
  %v231 = vmax.f32 %v197, 0.0
  %v232 = vmax.f32 %v151, 0.0
  %v233 = vmax.f32 %v200, 0.0
  %v234 = vmax.f32 %v153, 0.0
  %v235 = vmax.f32 %v202, 0.0
  %v236 = vpack.c.bf16 %v206, %v204
  %v237 = vpack.c.bf16 %v207, %v205
  %v238 = vpack.c.bf16 %v210, %v208
  %v239 = vpack.c.bf16 %v211, %v209
  %v240 = vpack.c.bf16 %v214, %v212
  %v241 = vpack.c.bf16 %v215, %v213
  %v242 = vpack.c.bf16 %v218, %v216
  %v243 = vpack.c.bf16 %v219, %v217
  %v244 = vpack.c.bf16 %v222, %v220
  %v245 = vpack.c.bf16 %v223, %v221
  %v246 = vpack.c.bf16 %v226, %v224
  %v247 = vpack.c.bf16 %v227, %v225
  %v248 = vpack.c.bf16 %v230, %v228
  %v249 = vpack.c.bf16 %v231, %v229
  %v250 = vpack.c.bf16 %v234, %v232
  %v251 = vpack.c.bf16 %v235, %v233
  %v252 = vld [vmem:[%s3] sm:$0xf]
  %v253 = vld [vmem:[%s3 + $0x4] sm:$0xf]
  %v254 = vld [vmem:[%s3 + $0x8] sm:$0xf]
  %v255 = vld [vmem:[%s3 + $0xc] sm:$0xf]
  %v256 = vld [vmem:[%s3 + $0x10] sm:$0xf]
  %v257 = vld [vmem:[%s3 + $0x14] sm:$0xf]
  %v258 = vld [vmem:[%s3 + $0x18] sm:$0xf]
  %v259 = vld [vmem:[%s3 + $0x1c] sm:$0xf]
  %v260 = vld [vmem:[%s3 + $0x20] sm:$0xf]
  %v261 = vld [vmem:[%s3 + $0x24] sm:$0xf]
  %v262 = vld [vmem:[%s3 + $0x28] sm:$0xf]
  %v263 = vld [vmem:[%s3 + $0x2c] sm:$0xf]
  %v264 = vld [vmem:[%s3 + $0x30] sm:$0xf]
  %v265 = vld [vmem:[%s3 + $0x34] sm:$0xf]
  %v266 = vld [vmem:[%s3 + $0x38] sm:$0xf]
  %v267 = vld [vmem:[%s3 + $0x3c] sm:$0xf]
  %v268 = vld [vmem:[%s3 + $0x40] sm:$0xf]
  %v269 = vld [vmem:[%s3 + $0x44] sm:$0xf]
  %v270 = vld [vmem:[%s3 + $0x48] sm:$0xf]
  %v271 = vld [vmem:[%s3 + $0x4c] sm:$0xf]
  %v272 = vld [vmem:[%s3 + $0x50] sm:$0xf]
  %v273 = vld [vmem:[%s3 + $0x54] sm:$0xf]
  %v274 = vld [vmem:[%s3 + $0x58] sm:$0xf]
  %v275 = vld [vmem:[%s3 + $0x5c] sm:$0xf]
  %v276 = vld [vmem:[%s3 + $0x60] sm:$0xf]
  %v277 = vld [vmem:[%s3 + $0x64] sm:$0xf]
  %v278 = vld [vmem:[%s3 + $0x68] sm:$0xf]
  %v279 = vld [vmem:[%s3 + $0x6c] sm:$0xf]
  %v280 = vld [vmem:[%s3 + $0x70] sm:$0xf]
  %v281 = vld [vmem:[%s3 + $0x74] sm:$0xf]
  %v282 = vld [vmem:[%s3 + $0x78] sm:$0xf]
  %v283 = vld [vmem:[%s3 + $0x7c] sm:$0xf]
  %v284 = vld [vmem:[%s4] sm:$0x1]
  %v286 = vperm.slane %v284, 0
  %v320 = vunpack.c.l.b16 %v252
  %v321 = vunpack.c.l.b16 %v253
  %v322 = vunpack.c.l.b16 %v254
  %v323 = vunpack.c.l.b16 %v255
  %v324 = vunpack.c.l.b16 %v256
  %v325 = vunpack.c.l.b16 %v257
  %v326 = vunpack.c.l.b16 %v258
  %v327 = vunpack.c.l.b16 %v259
  %v328 = vunpack.c.l.b16 %v260
  %v329 = vunpack.c.l.b16 %v261
  %v330 = vunpack.c.l.b16 %v262
  %v331 = vunpack.c.l.b16 %v263
  %v332 = vunpack.c.l.b16 %v264
  %v333 = vunpack.c.l.b16 %v265
  %v334 = vunpack.c.l.b16 %v266
  %v335 = vunpack.c.l.b16 %v267
  %v336 = vunpack.c.l.b16 %v268
  %v337 = vunpack.c.l.b16 %v269
  %v338 = vunpack.c.l.b16 %v270
  %v339 = vunpack.c.l.b16 %v271
  %v340 = vunpack.c.l.b16 %v272
  %v341 = vunpack.c.l.b16 %v273
  %v342 = vunpack.c.l.b16 %v274
  %v343 = vunpack.c.l.b16 %v275
  %v344 = vunpack.c.l.b16 %v276
  %v345 = vunpack.c.l.b16 %v277
  %v346 = vunpack.c.l.b16 %v278
  %v347 = vunpack.c.l.b16 %v279
  %v348 = vunpack.c.l.b16 %v280
  %v349 = vunpack.c.l.b16 %v281
  %v350 = vunpack.c.l.b16 %v282
  %v351 = vunpack.c.l.b16 %v283
  %v352 = vpack.c.b16 %v321, %v320
  %v353 = vpack.c.b16 %v323, %v322
  %v354 = vpack.c.b16 %v325, %v324
  %v355 = vpack.c.b16 %v327, %v326
  %v356 = vpack.c.b16 %v329, %v328
  %v357 = vpack.c.b16 %v331, %v330
  %v358 = vpack.c.b16 %v333, %v332
  %v359 = vpack.c.b16 %v335, %v334
  %v360 = vpack.c.b16 %v337, %v336
  %v361 = vpack.c.b16 %v339, %v338
  %v362 = vpack.c.b16 %v341, %v340
  %v363 = vpack.c.b16 %v343, %v342
  %v364 = vpack.c.b16 %v345, %v344
  %v365 = vpack.c.b16 %v347, %v346
  %v366 = vpack.c.b16 %v349, %v348
  %v367 = vpack.c.b16 %v351, %v350
  %384 = vmatpush.bf16.msra.mxu0 %v359
  %385 = vmatpush.bf16.msra.mxu0 %v358
  %386 = vmatpush.bf16.msra.mxu0 %v357
  %387 = vmatpush.bf16.msra.mxu0 %v356
  %388 = vmatpush.bf16.msra.mxu0 %v355
  %389 = vmatpush.bf16.msra.mxu0 %v354
  %390 = vmatpush.bf16.msra.mxu0 %v353
  %391 = vmatpush.bf16.msra.mxu0 %v352
  %392 = vmatmul.bf16.gmra.mxu0 %v236
  %v393 = vpop.f32.mrf.mxu0
  %v394 = vadd.f32 %v286, %v393
  %v395 = vpop.f32.mrf.mxu0
  %v396 = vadd.f32 %v286, %v395
  %397 = vmatmul.bf16.gmra.mxu0 %v238
  %v398 = vpop.f32.mrf.mxu0
  %v399 = vadd.f32 %v286, %v398
  %v400 = vpop.f32.mrf.mxu0
  %v401 = vadd.f32 %v286, %v400
  %402 = vmatmul.bf16.gmra.mxu0 %v240
  %v403 = vpop.f32.mrf.mxu0
  %v404 = vadd.f32 %v286, %v403
  %v405 = vpop.f32.mrf.mxu0
  %v406 = vadd.f32 %v286, %v405
  %407 = vmatmul.bf16.gmra.mxu0 %v242
  %v408 = vpop.f32.mrf.mxu0
  %v409 = vadd.f32 %v286, %v408
  %v410 = vpop.f32.mrf.mxu0
  %v411 = vadd.f32 %v286, %v410
  %412 = vmatmul.bf16.gmra.mxu0 %v244
  %v413 = vpop.f32.mrf.mxu0
  %v414 = vadd.f32 %v286, %v413
  %v415 = vpop.f32.mrf.mxu0
  %v416 = vadd.f32 %v286, %v415
  %417 = vmatmul.bf16.gmra.mxu0 %v246
  %v418 = vpop.f32.mrf.mxu0
  %v419 = vadd.f32 %v286, %v418
  %v420 = vpop.f32.mrf.mxu0
  %v421 = vadd.f32 %v286, %v420
  %422 = vmatmul.bf16.gmra.mxu0 %v248
  %v423 = vpop.f32.mrf.mxu0
  %v424 = vadd.f32 %v286, %v423
  %v425 = vpop.f32.mrf.mxu0
  %v426 = vadd.f32 %v286, %v425
  %427 = vmatmul.bf16.gmra.mxu0 %v250
  %v428 = vpop.f32.mrf.mxu0
  %v429 = vadd.f32 %v286, %v428
  %v430 = vpop.f32.mrf.mxu0
  %v431 = vadd.f32 %v286, %v430
  %432 = vdwg.mxu0
  %433 = vmatpush.bf16.msra.mxu0 %v367
  %434 = vmatpush.bf16.msra.mxu0 %v366
  %435 = vmatpush.bf16.msra.mxu0 %v365
  %436 = vmatpush.bf16.msra.mxu0 %v364
  %437 = vmatpush.bf16.msra.mxu0 %v363
  %438 = vmatpush.bf16.msra.mxu0 %v362
  %439 = vmatpush.bf16.msra.mxu0 %v361
  %440 = vmatpush.bf16.msra.mxu0 %v360
  %441 = vmatmul.bf16.gmra.mxu0 %v237
  %v442 = vpop.f32.mrf.mxu0
  %v443 = vadd.f32 %v394, %v442
  %v444 = vpop.f32.mrf.mxu0
  %v445 = vadd.f32 %v396, %v444
  %446 = vmatmul.bf16.gmra.mxu0 %v239
  %v447 = vpop.f32.mrf.mxu0
  %v448 = vadd.f32 %v399, %v447
  %v449 = vpop.f32.mrf.mxu0
  %v450 = vadd.f32 %v401, %v449
  %451 = vmatmul.bf16.gmra.mxu0 %v241
  %v452 = vpop.f32.mrf.mxu0
  %v453 = vadd.f32 %v404, %v452
  %v454 = vpop.f32.mrf.mxu0
  %v455 = vadd.f32 %v406, %v454
  %456 = vmatmul.bf16.gmra.mxu0 %v243
  %v457 = vpop.f32.mrf.mxu0
  %v458 = vadd.f32 %v409, %v457
  %v459 = vpop.f32.mrf.mxu0
  %v460 = vadd.f32 %v411, %v459
  %461 = vmatmul.bf16.gmra.mxu0 %v245
  %v462 = vpop.f32.mrf.mxu0
  %v463 = vadd.f32 %v414, %v462
  %v464 = vpop.f32.mrf.mxu0
  %v465 = vadd.f32 %v416, %v464
  %466 = vmatmul.bf16.gmra.mxu0 %v247
  %v467 = vpop.f32.mrf.mxu0
  %v468 = vadd.f32 %v419, %v467
  %v469 = vpop.f32.mrf.mxu0
  %v470 = vadd.f32 %v421, %v469
  %471 = vmatmul.bf16.gmra.mxu0 %v249
  %v472 = vpop.f32.mrf.mxu0
  %v473 = vadd.f32 %v424, %v472
  %v474 = vpop.f32.mrf.mxu0
  %v475 = vadd.f32 %v426, %v474
  %476 = vmatmul.bf16.gmra.mxu0 %v251
  %v477 = vpop.f32.mrf.mxu0
  %v478 = vadd.f32 %v429, %v477
  %v479 = vpop.f32.mrf.mxu0
  %v480 = vadd.f32 %v431, %v479
  %481 = vdwg.mxu0
  %v482 = vadd.f32 %v443, %v27
  %v483 = vadd.f32 %v445, %v28
  %v484 = vadd.f32 %v448, %v29
  %v485 = vadd.f32 %v450, %v30
  %v486 = vadd.f32 %v453, %v31
  %v487 = vadd.f32 %v455, %v32
  %v488 = vadd.f32 %v458, %v33
  %v489 = vadd.f32 %v460, %v34
  %v490 = vadd.f32 %v463, %v35
  %v491 = vadd.f32 %v465, %v36
  %v492 = vadd.f32 %v468, %v37
  %v493 = vadd.f32 %v470, %v38
  %v494 = vadd.f32 %v473, %v39
  %v495 = vadd.f32 %v475, %v40
  %v496 = vadd.f32 %v478, %v41
  %v497 = vadd.f32 %v480, %v42
  %v498 = vpack.c.bf16 %v483, %v482
  %v499 = vpack.c.bf16 %v485, %v484
  %v500 = vpack.c.bf16 %v487, %v486
  %v501 = vpack.c.bf16 %v489, %v488
  %v502 = vpack.c.bf16 %v491, %v490
  %v503 = vpack.c.bf16 %v493, %v492
  %v504 = vpack.c.bf16 %v495, %v494
  %v505 = vpack.c.bf16 %v497, %v496
  %v506 = vld [vmem:[%s5] sm:$0xf]
  %v507 = vld [vmem:[%s5 + $0x4] sm:$0xf]
  %v508 = vld [vmem:[%s5 + $0x8] sm:$0xf]
  %v509 = vld [vmem:[%s5 + $0xc] sm:$0xf]
  %v510 = vld [vmem:[%s6] sm:$0x1]
  %v512 = vperm.slane %v510, 0
  %v518 = vunpack.c.l.b16 %v506
  %v519 = vunpack.c.l.b16 %v507
  %v520 = vunpack.c.l.b16 %v508
  %v521 = vunpack.c.l.b16 %v509
  %v522 = vpack.c.b16 %v519, %v518
  %v523 = vpack.c.b16 %v521, %v520
  %v527 = vsel %vm81, %v498, 0
  %v530 = vsel %vm81, %v499, 0
  %v533 = vsel %vm81, %v500, 0
  %v536 = vsel %vm81, %v501, 0
  %v539 = vsel %vm81, %v502, 0
  %v542 = vsel %vm81, %v503, 0
  %v545 = vsel %vm81, %v504, 0
  %v548 = vsel %vm81, %v505, 0
  %550 = vmatpush.bf16.msra.mxu0 0
  %551 = vmatpush.bf16.msra.mxu0 0
  %552 = vmatpush.bf16.msra.mxu0 0
  %553 = vmatpush.bf16.msra.mxu0 0
  %554 = vmatpush.bf16.msra.mxu0 0
  %555 = vmatpush.bf16.msra.mxu0 0
  %556 = vmatpush.bf16.msra.mxu0 %v523
  %557 = vmatpush.bf16.msra.mxu0 %v522
  %558 = vmatmul.bf16.gmra.mxu0 %v527
  %v559 = vpop.f32.mrf.mxu0
  %v560 = vadd.f32 %v512, %v559
  %v561 = vpop.f32.mrf.mxu0
  %v562 = vadd.f32 %v512, %v561
  %563 = vmatmul.bf16.gmra.mxu0 %v530
  %v564 = vpop.f32.mrf.mxu0
  %v565 = vadd.f32 %v512, %v564
  %v566 = vpop.f32.mrf.mxu0
  %v567 = vadd.f32 %v512, %v566
  %568 = vmatmul.bf16.gmra.mxu0 %v533
  %v569 = vpop.f32.mrf.mxu0
  %v570 = vadd.f32 %v512, %v569
  %v571 = vpop.f32.mrf.mxu0
  %v572 = vadd.f32 %v512, %v571
  %573 = vmatmul.bf16.gmra.mxu0 %v536
  %v574 = vpop.f32.mrf.mxu0
  %v575 = vadd.f32 %v512, %v574
  %v576 = vpop.f32.mrf.mxu0
  %v577 = vadd.f32 %v512, %v576
  %578 = vmatmul.bf16.gmra.mxu0 %v539
  %v579 = vpop.f32.mrf.mxu0
  %v580 = vadd.f32 %v512, %v579
  %v581 = vpop.f32.mrf.mxu0
  %v582 = vadd.f32 %v512, %v581
  %583 = vmatmul.bf16.gmra.mxu0 %v542
  %v584 = vpop.f32.mrf.mxu0
  %v585 = vadd.f32 %v512, %v584
  %v586 = vpop.f32.mrf.mxu0
  %v587 = vadd.f32 %v512, %v586
  %588 = vmatmul.bf16.gmra.mxu0 %v545
  %v589 = vpop.f32.mrf.mxu0
  %v590 = vadd.f32 %v512, %v589
  %v591 = vpop.f32.mrf.mxu0
  %v592 = vadd.f32 %v512, %v591
  %593 = vmatmul.bf16.gmra.mxu0 %v548
  %v594 = vpop.f32.mrf.mxu0
  %v595 = vadd.f32 %v512, %v594
  %v596 = vpop.f32.mrf.mxu0
  %v597 = vadd.f32 %v512, %v596
  %598 = vdwg.mxu0
  %599 = vst [vmem:[%s7] sm:$0xff] %v560
  %600 = vst [vmem:[%s7 + $0x8] sm:$0xff] %v562
  %601 = vst [vmem:[%s7 + $0x10] sm:$0xff] %v565
  %602 = vst [vmem:[%s7 + $0x18] sm:$0xff] %v567
  %603 = vst [vmem:[%s7 + $0x20] sm:$0xff] %v570
  %604 = vst [vmem:[%s7 + $0x28] sm:$0xff] %v572
  %605 = vst [vmem:[%s7 + $0x30] sm:$0xff] %v575
  %606 = vst [vmem:[%s7 + $0x38] sm:$0xff] %v577
  %607 = vst [vmem:[%s7 + $0x40] sm:$0xff] %v580
  %608 = vst [vmem:[%s7 + $0x48] sm:$0xff] %v582
  %609 = vst [vmem:[%s7 + $0x50] sm:$0xff] %v585
  %610 = vst [vmem:[%s7 + $0x58] sm:$0xff] %v587
  %611 = vst [vmem:[%s7 + $0x60] sm:$0xff] %v590
  %612 = vst [vmem:[%s7 + $0x68] sm:$0xff] %v592
  %613 = vst [vmem:[%s7 + $0x70] sm:$0xff] %v595
  %614 = vst [vmem:[%s7 + $0x78] sm:$0xff] %v597
  // Predicated region
  $region30: #{classifier_forward.1} parent=0 // pred_check
    _
  $region31: #{classifier_forward.1} parent=0 // pred_check_branch
    %616 = sbr.rel (0) target = $region33
  $region32: #{classifier_forward.1} parent=0 // pred_region
    _
  $region33: #{classifier_forward.1} parent=0 // pred_fallthru
    _
  // Predicated region
  $region34: #{classifier_forward.1} parent=0 // pred_check
    _
  $region35: #{classifier_forward.1} parent=0 // pred_check_branch
    %618 = sbr.rel (0) target = $region37
  $region36: #{classifier_forward.1} parent=0 // pred_region
    _
  $region37: #{classifier_forward.1} parent=0 // pred_fallthru
    _

</llo_original>
